<compile_context>
chip_gen: v5e
topology: v5e:2x2
jax: 0.10.0
libtpu: 0.0.40
codegen_flags: <defaults>
</compile_context>

<pallas_src>
import functools
import math

import jax
import jax.numpy as jnp
from jax import lax
from jax.experimental import pallas as pl
from jax.experimental.pallas import tpu as pltpu


def _round_up(x, m):
    return ((x + m - 1) // m) * m


def _vmem_capacity_bytes():
    """Per-core VMEM capacity (generation-aware); conservative fallback."""
    try:
        return int(pltpu.get_tpu_info().vmem_capacity_bytes)
    except Exception:
        return 64 << 20  # v7x per-TC size: safe lower bound for all gens.


def _table_specs(vocab, d_model):
    """Candidate BlockSpecs for the resident embedding table.

    Preferred: single-buffered (constant block index -> a second pipeline
    buffer buys nothing and doubles the table's VMEM footprint). A plain spec
    is kept as fallback in case this JAX build rejects Buffered(1).
    """
    index_map = lambda i: (0, 0)
    specs = []
    try:
        specs.append(
            pl.BlockSpec((vocab, d_model), index_map, pipeline_mode=pl.Buffered(1)))
    except Exception:
        pass
    specs.append(pl.BlockSpec((vocab, d_model), index_map))
    return specs


def _encoding_onehot_kernel(ids_ref, emb_ref, pe_ref, out_ref, *, scale):
    """Small-vocab path: dense MXU one-hot gather, fused scale + PE add.

    ids_ref : VMEM (block_q, 1) int32
    emb_ref : VMEM (vocab, d_model), native dtype, resident (constant block)
    pe_ref  : VMEM (block_q, d_model) f32
    out_ref : VMEM (block_q, d_model) f32
    """
    block_q = out_ref.shape[0]
    vocab = emb_ref.shape[0]
    ids = ids_ref[...]                                            # (block_q, 1)
    iota = lax.broadcasted_iota(jnp.int32, (block_q, vocab), 1)
    # Float one-hot (v7x MXU has no int path); exactly one 1.0 per row so the
    # matmul reproduces the gathered row bit-exactly with f32 accumulation.
    one_hot = (iota == ids).astype(emb_ref.dtype)
    gathered = jnp.dot(one_hot, emb_ref[...],
                       preferred_element_type=jnp.float32)        # (block_q, d)
    if scale != 1.0:
        gathered = scale * gathered
    out_ref[...] = gathered + pe_ref[...]


def _encoding_gather_kernel(ids_ref, emb_ref, pe_ref, out_ref, *, scale, block_q,
                            group=8, col_chunk=256):
    """Large-vocab path: resident-table row gather, grouped 8-row stores.

    ids_ref : SMEM (seq_padded,) int32  (untiled; scalar reads only)
    emb_ref : VMEM (vocab, d_model), native dtype, resident (constant block)
    pe_ref  : VMEM (block_q, d_model) f32
    out_ref : VMEM (block_q, d_model) f32

    Rows are assembled in sublane-aligned groups of 8 so every store is a full
    (8, chunk) slab instead of a 1/8-utilization masked vst; columns are
    chunked so in-flight row copies stay within the 64-vreg budget.
    """
    assert block_q % group == 0
    d_model = out_ref.shape[-1]
    block_base = pl.program_id(0) * block_q
    col_bounds = [(c, min(col_chunk, d_model - c))
                  for c in range(0, d_model, col_chunk)]

    def body(g, carry):
        base = pl.multiple_of(g * group, group)                   # aligned offset
        toks = [ids_ref[block_base + base + r] for r in range(group)]
        for c0, cw in col_bounds:
            rows = [emb_ref[pl.ds(toks[r], 1), c0:c0 + cw].astype(jnp.float32)
                    for r in range(group)]
            tile = jnp.concatenate(rows, axis=0)                  # (group, cw)
            if scale != 1.0:
                tile = scale * tile
            out_ref[pl.ds(base, group), c0:c0 + cw] = (
                tile + pe_ref[pl.ds(base, group), c0:c0 + cw])
        return carry

    lax.fori_loop(0, block_q // group, body, 0)


def encoding_forward(token_ids, emb_table, pe_table, *, scale=True,
                     block_q=None, use_onehot=None):
    """token_ids: [seq] int; emb_table: [vocab, d] (native dtype); pe_table: [max_len, d]."""
    seq = int(token_ids.shape[0])
    vocab, d_model = (int(s) for s in emb_table.shape)
    if seq > pe_table.shape[0]:
        raise ValueError(
            f"sequence length {seq} exceeds positional-encoding table "
            f"({pe_table.shape[0]} rows)")

    itemsize = jnp.dtype(emb_table.dtype).itemsize
    table_bytes = vocab * d_model * itemsize
    vmem_cap = _vmem_capacity_bytes()

    # Path selection: MXU one-hot gather for small vocabularies; in-kernel row
    # gather (resident table) otherwise.
    if use_onehot is None:
        use_onehot = vocab <= 2048

    # Generation-aware block size: larger tiles on 128-MiB-VMEM chips
    # (v5e/v6e), <= 256 on v7x (64 MiB per TensorCore).
    if block_q is None:
        block_q = 512 if vmem_cap > (96 << 20) else 256
        block_q = min(block_q, _round_up(max(seq, 1), 8))
    block_q = max(8, _round_up(int(block_q), 8))

    def vmem_needed(bq):
        tile = bq * d_model * 4                       # f32 PE / out tiles
        onehot = bq * _round_up(vocab, 128) * max(itemsize, 2) if use_onehot else 0
        # table single-buffered (constant block index) + double-buffered PE/out
        # tiles + in-kernel temporaries + headroom.
        return table_bytes + 4 * tile + onehot + (2 << 20)

    while block_q > 8 and vmem_needed(block_q) > int(0.85 * vmem_cap):
        block_q = max(8, _round_up(block_q // 2, 8))

    seq_padded = _round_up(max(seq, 1), block_q)
    num_blocks = seq_padded // block_q

    # Bounds-guard the ids (padded / bad ids can never index outside the
    # table; note this masks upstream id bugs) and pad to whole blocks.
    ids = jnp.clip(token_ids.astype(jnp.int32), 0, vocab - 1)
    ids = jnp.pad(ids, (0, seq_padded - seq))

    # PE rows for the real tokens; padded rows get zeros (sliced off below).
    pe = pe_table[:seq, :d_model].astype(jnp.float32)
    if seq_padded > seq:
        pe = jnp.pad(pe, ((0, seq_padded - seq), (0, 0)))

    scale_const = float(math.sqrt(d_model)) if scale else 1.0

    pe_spec = pl.BlockSpec((block_q, d_model), lambda i: (i, 0))
    out_spec = pl.BlockSpec((block_q, d_model), lambda i: (i, 0))

    if use_onehot:
        kernel = functools.partial(_encoding_onehot_kernel, scale=scale_const)
        ids_in = ids[:, None]                                     # (seq_padded, 1)
        ids_spec = pl.BlockSpec((block_q, 1), lambda i: (i, 0))
        flops = 2 * seq_padded * vocab * d_model
    else:
        kernel = functools.partial(_encoding_gather_kernel, scale=scale_const,
                                   block_q=block_q)
        ids_in = ids                                              # (seq_padded,)
        # ids never feed an index_map -> plain SMEM input, no scalar prefetch.
        ids_spec = pl.BlockSpec(memory_space=pltpu.MemorySpace.SMEM)
        flops = 2 * seq_padded * d_model

    cost = pl.CostEstimate(
        flops=flops, transcendentals=0,
        bytes_accessed=table_bytes + seq_padded * 4 + 2 * seq_padded * d_model * 4)

    # Always make the VMEM budget explicit (v5e's 16-MiB default otherwise
    # silently caps 16-32 MiB needs); clamp below physical capacity.
    vmem_limit = int(min(max(vmem_needed(block_q), 32 << 20),
                         int(0.95 * vmem_cap)))
    cparams = pltpu.CompilerParams(
        dimension_semantics=("parallel",),      # lets v7x shard seq over 2 TCs
        vmem_limit_bytes=vmem_limit)

    out = None
    last_err = None
    for table_spec in _table_specs(vocab, d_model):
        try:
            out = pl.pallas_call(
                kernel,
                out_shape=jax.ShapeDtypeStruct((seq_padded, d_model), jnp.float32),
                grid=(num_blocks,),
                in_specs=[ids_spec, table_spec, pe_spec],
                out_specs=out_spec,
                compiler_params=cparams,
                cost_estimate=cost,
            )(ids_in, emb_table, pe)
            break
        except Exception as err:   # pragma: no cover - Buffered(1) compat path
            last_err = err
            out = None
    if out is None:
        raise last_err

    return out[:seq]


def make_positional_encoding(d_model, max_len=1000, warmup=10000):
    """Reproduces PositionalEncoding.__init__ exactly (float32).

    NOTE: the exponent is 2*arange(0, d, 2)/d_model, matching the PyTorch
    module verbatim (intentionally NOT the canonical 1/10000^(2i/d) form).
    """
    position = jnp.arange(0, max_len, dtype=jnp.float32)[:, None]          # [L,1]
    div_term = jnp.asarray(warmup, jnp.float32) ** (
        2.0 * jnp.arange(0, d_model, 2, dtype=jnp.float32) / d_model)       # [d/2]
    pe = jnp.zeros((max_len, d_model), dtype=jnp.float32)
    pe = pe.at[:, 0::2].set(jnp.sin(position / div_term))
    pe = pe.at[:, 1::2].set(jnp.cos(position / div_term))
    return pe


def reference_forward(token_ids, emb_table, pe_table, *, scale=True):
    seq = token_ids.shape[0]
    d_model = emb_table.shape[1]
    gathered = emb_table[token_ids]                                          # [seq, d]
    s = jnp.sqrt(jnp.asarray(d_model, jnp.float32)) if scale else 1.0
    return s * gathered + pe_table[:seq, :d_model]


if __name__ == "__main__":
    vocab_size = 50
    d_model = 32
    seq = 8

    key = jax.random.PRNGKey(0)
    k_emb, k_ids, k_ids2, k_ids3 = jax.random.split(key, 4)

    # Deterministic synthetic parameters (nn.Embedding ~ N(0,1) init).
    emb_table = jax.random.normal(k_emb, (vocab_size, d_model), dtype=jnp.float32)
    pe_table = make_positional_encoding(d_model, max_len=1000, warmup=10000)

    # 1) Small sequence, auto path (MXU one-hot gather).
    token_ids = jax.random.randint(k_ids, (seq,), 0, vocab_size, dtype=jnp.int32)
    out = jax.block_until_ready(
        encoding_forward(token_ids, emb_table, pe_table, scale=True))
    ref = reference_forward(token_ids, emb_table, pe_table, scale=True)
    assert out.shape == (seq, d_model)
    assert out.dtype == jnp.float32
    assert jnp.allclose(out, ref, atol=1e-5, rtol=1e-5)

    # 2) Longer sequence, multiple grid blocks + ragged-tail padding (one-hot).
    seq2 = 300
    token_ids2 = jax.random.randint(k_ids2, (seq2,), 0, vocab_size, dtype=jnp.int32)
    out2 = jax.block_until_ready(
        encoding_forward(token_ids2, emb_table, pe_table, scale=True, block_q=128))
    ref2 = reference_forward(token_ids2, emb_table, pe_table, scale=True)
    assert out2.shape == (seq2, d_model)
    assert jnp.allclose(out2, ref2, atol=1e-5, rtol=1e-5)

    # 3) Forced large-vocab path (grouped 8-row gather), several blocks/groups.
    seq3 = 40
    token_ids3 = jax.random.randint(k_ids3, (seq3,), 0, vocab_size, dtype=jnp.int32)
    out3 = jax.block_until_ready(
        encoding_forward(token_ids3, emb_table, pe_table, scale=True,
                         block_q=16, use_onehot=False))
    ref3 = reference_forward(token_ids3, emb_table, pe_table, scale=True)
    assert out3.shape == (seq3, d_model)
    assert jnp.allclose(out3, ref3, atol=1e-5, rtol=1e-5)

    # 4) scale=False branch of the module.
    out4 = jax.block_until_ready(
        encoding_forward(token_ids, emb_table, pe_table, scale=False))
    ref4 = reference_forward(token_ids, emb_table, pe_table, scale=False)
    assert jnp.allclose(out4, ref4, atol=1e-5, rtol=1e-5)

    print("KERNEL_OK")
</pallas_src>

<mosaic_0001>
module attributes {stable_mosaic.version = 11 : i64} {
  func.func @_encoding_onehot_kernel(%arg0: i32, %arg1: memref<8x1xi32, #tpu.memory_space<vmem>>, %arg2: memref<50x32xf32, #tpu.memory_space<vmem>>, %arg3: memref<8x32xf32, #tpu.memory_space<vmem>>, %arg4: memref<8x32xf32, #tpu.memory_space<vmem>>) attributes {dimension_semantics = [#tpu.dimension_semantics<parallel>], iteration_bounds = array<i64: 1>, scalar_prefetch = 0 : i64, scratch_operands = 0 : i64, tpu.core_type = #tpu.core_type<tc>, window_params = [{transform_indices = @transform_0, window_bounds = array<i64: 8, 1>}, {pipeline_mode = #tpu.pipeline_mode<synchronous>, transform_indices = @transform_1, window_bounds = array<i64: 50, 32>}, {transform_indices = @transform_2, window_bounds = array<i64: 8, 32>}, {transform_indices = @transform_3, window_bounds = array<i64: 8, 32>}]} {
    %c0 = arith.constant 0 : index
    %c0_0 = arith.constant 0 : index
    %0 = vector.load %arg1[%c0, %c0_0] : memref<8x1xi32, #tpu.memory_space<vmem>>, vector<8x1xi32>
    %1 = tpu.iota {dimensions = array<i32: 1>} : vector<8x50xi32>
    %2 = vector.broadcast %0 : vector<8x1xi32> to vector<8x50xi32>
    %3 = arith.cmpi eq, %1, %2 : vector<8x50xi32>
    %4 = arith.extui %3 : vector<8x50xi1> to vector<8x50xi32>
    %5 = arith.sitofp %4 : vector<8x50xi32> to vector<8x50xf32>
    %c0_1 = arith.constant 0 : index
    %c0_2 = arith.constant 0 : index
    %6 = vector.load %arg2[%c0_1, %c0_2] : memref<50x32xf32, #tpu.memory_space<vmem>>, vector<50x32xf32>
    %cst = arith.constant dense<0.000000e+00> : vector<8x32xf32>
    %7 = tpu.matmul %5, %6, %cst {dimension_numbers = #tpu.dot_dimension_numbers<[1], [0], [0], [1], [0, 0, 1, 1], [], []>} : vector<8x50xf32>, vector<50x32xf32>, vector<8x32xf32> -> vector<8x32xf32>
    %cst_3 = arith.constant 5.65685415 : f32
    %8 = vector.broadcast %cst_3 : f32 to vector<8x32xf32>
    %9 = arith.mulf %8, %7 : vector<8x32xf32>
    %c0_4 = arith.constant 0 : index
    %c0_5 = arith.constant 0 : index
    %10 = vector.load %arg3[%c0_4, %c0_5] : memref<8x32xf32, #tpu.memory_space<vmem>>, vector<8x32xf32>
    %11 = arith.addf %9, %10 : vector<8x32xf32>
    %c0_6 = arith.constant 0 : index
    %c0_7 = arith.constant 0 : index
    %12 = vector.load %arg4[%c0_6, %c0_7] : memref<8x32xf32, #tpu.memory_space<vmem>>, vector<8x32xf32>
    tpu.vector_store %arg4[%c0_6, %c0_7], %11 {strides = array<i32>} : memref<8x32xf32, #tpu.memory_space<vmem>>, vector<8x32xf32>,
    return
  }
  func.func @transform_0(%arg0: i32) -> (i32, i32) {
    %c0_i32 = arith.constant 0 : i32
    %c0_i32_0 = arith.constant 0 : i32
    return %arg0, %c0_i32 : i32, i32
  }
  func.func @transform_1(%arg0: i32) -> (i32, i32) {
    %c0_i32 = arith.constant 0 : i32
    %c0_i32_0 = arith.constant 0 : i32
    %c0_i32_1 = arith.constant 0 : i32
    return %c0_i32, %c0_i32_0 : i32, i32
  }
  func.func @transform_2(%arg0: i32) -> (i32, i32) {
    %c0_i32 = arith.constant 0 : i32
    %c0_i32_0 = arith.constant 0 : i32
    return %arg0, %c0_i32 : i32, i32
  }
  func.func @transform_3(%arg0: i32) -> (i32, i32) {
    %c0_i32 = arith.constant 0 : i32
    %c0_i32_0 = arith.constant 0 : i32
    return %arg0, %c0_i32 : i32, i32
  }
}

module attributes {stable_mosaic.version = 11 : i64} {
  func.func @_encoding_onehot_kernel(%arg0: i32, %arg1: memref<8x1xi32, #tpu.memory_space<vmem>>, %arg2: memref<50x32xf32, #tpu.memory_space<vmem>>, %arg3: memref<8x32xf32, #tpu.memory_space<vmem>>, %arg4: memref<8x32xf32, #tpu.memory_space<vmem>>) attributes {dimension_semantics = [#tpu.dimension_semantics<parallel>], iteration_bounds = array<i64: 1>, scalar_prefetch = 0 : i64, scratch_operands = 0 : i64, tpu.core_type = #tpu.core_type<tc>, window_params = [{transform_indices = @transform_0, window_bounds = array<i64: 8, 1>}, {pipeline_mode = #tpu.pipeline_mode<synchronous>, transform_indices = @transform_1, window_bounds = array<i64: 50, 32>}, {transform_indices = @transform_2, window_bounds = array<i64: 8, 32>}, {transform_indices = @transform_3, window_bounds = array<i64: 8, 32>}]} {
    %c0 = arith.constant 0 : index
    %c0_0 = arith.constant 0 : index
    %0 = vector.load %arg1[%c0, %c0_0] : memref<8x1xi32, #tpu.memory_space<vmem>>, vector<8x1xi32>
    %1 = tpu.iota {dimensions = array<i32: 1>} : vector<8x50xi32>
    %2 = vector.broadcast %0 : vector<8x1xi32> to vector<8x50xi32>
    %3 = arith.cmpi eq, %1, %2 : vector<8x50xi32>
    %4 = arith.extui %3 : vector<8x50xi1> to vector<8x50xi32>
    %5 = arith.sitofp %4 : vector<8x50xi32> to vector<8x50xf32>
    %c0_1 = arith.constant 0 : index
    %c0_2 = arith.constant 0 : index
    %6 = vector.load %arg2[%c0_1, %c0_2] : memref<50x32xf32, #tpu.memory_space<vmem>>, vector<50x32xf32>
    %cst = arith.constant dense<0.000000e+00> : vector<8x32xf32>
    %7 = tpu.matmul %5, %6, %cst {dimension_numbers = #tpu.dot_dimension_numbers<[1], [0], [0], [1], [0, 0, 1, 1], [], []>} : vector<8x50xf32>, vector<50x32xf32>, vector<8x32xf32> -> vector<8x32xf32>
    %cst_3 = arith.constant 5.65685415 : f32
    %8 = vector.broadcast %cst_3 : f32 to vector<8x32xf32>
    %9 = arith.mulf %8, %7 : vector<8x32xf32>
    %c0_4 = arith.constant 0 : index
    %c0_5 = arith.constant 0 : index
    %10 = vector.load %arg3[%c0_4, %c0_5] : memref<8x32xf32, #tpu.memory_space<vmem>>, vector<8x32xf32>
    %11 = arith.addf %9, %10 : vector<8x32xf32>
    %c0_6 = arith.constant 0 : index
    %c0_7 = arith.constant 0 : index
    %12 = vector.load %arg4[%c0_6, %c0_7] : memref<8x32xf32, #tpu.memory_space<vmem>>, vector<8x32xf32>
    tpu.vector_store %arg4[%c0_6, %c0_7], %11 {strides = array<i32>} : memref<8x32xf32, #tpu.memory_space<vmem>>, vector<8x32xf32>,
    return
  }
  func.func @transform_0(%arg0: i32) -> (i32, i32) {
    %c0_i32 = arith.constant 0 : i32
    %c0_i32_0 = arith.constant 0 : i32
    return %arg0, %c0_i32 : i32, i32
  }
  func.func @transform_1(%arg0: i32) -> (i32, i32) {
    %c0_i32 = arith.constant 0 : i32
    %c0_i32_0 = arith.constant 0 : i32
    %c0_i32_1 = arith.constant 0 : i32
    return %c0_i32, %c0_i32_0 : i32, i32
  }
  func.func @transform_2(%arg0: i32) -> (i32, i32) {
    %c0_i32 = arith.constant 0 : i32
    %c0_i32_0 = arith.constant 0 : i32
    return %arg0, %c0_i32 : i32, i32
  }
  func.func @transform_3(%arg0: i32) -> (i32, i32) {
    %c0_i32 = arith.constant 0 : i32
    %c0_i32_0 = arith.constant 0 : i32
    return %arg0, %c0_i32 : i32, i32
  }
}

</mosaic_0001>

<llo_original>
// kernel: tpu_custom_call.1
$region0: #{tpu_custom_call.1}
  #allocation0 [shape = 'u32[]', space=smem, size = 0x4, offset = 0x4, fixed_abs, tag = 'smem constant byte address 0x4 - core index']
  #allocation1 [shape = 'u32[72,128]{1,0:T(1,128)}', space=vmem, size = 0x9000, scoped, tag = 'internal scratch']
  %s0 = inlined_call_operand.vmem [shape: s32[8,1], index: 0, kind: input, shape index: {}]
  %s1 = inlined_call_operand.vmem [shape: f32[50,32], index: 1, kind: input, shape index: {}]
  %s2 = inlined_call_operand.vmem [shape: f32[8,32], index: 2, kind: input, shape index: {}]
  %s3 = inlined_call_operand.hbm [shape: f32[8,32], index: 3, kind: output, shape index: {}]
  %s4 = sld [smem:[#allocation0]]
  $region22: #{tpu_custom_call.1} parent=0
    _
  %s6 = ssub.s32 1, %s4
  %s7 = scalar_select 0, %s6, %s4
  $region1: #{tpu_custom_call.1} parent=0
    #allocation2 [shape = 'u8[4096]{0}', space=vmem, size = 0x1000, scoped, tag = 'output window, operand 0, single buffered']
    #allocation3 [shape = 's32[1]{0}', space=sflag, size = 0x4, scoped, tag = 'scoped memory for tpu_custom_call.1']
    %8 = vsyncpa [#allocation3], 0
    // Predicated region
    $region2: #{tpu_custom_call.1} parent=1 // pred_check
      _
    $region3: #{tpu_custom_call.1} parent=1 // pred_check_branch
      %10 = sbr.rel (0) target = $region5
    $region4: #{tpu_custom_call.1} parent=1 // pred_region
      _
    $region5: #{tpu_custom_call.1} parent=1 // pred_fallthru
      _
    // Predicated region
    $region6: #{tpu_custom_call.1} parent=1 // pred_check
      _
    $region7: #{tpu_custom_call.1} parent=1 // pred_check_branch
      %12 = sbr.rel (0) target = $region9
    $region8: #{tpu_custom_call.1} parent=1 // pred_region
      _
    $region9: #{tpu_custom_call.1} parent=1 // pred_fallthru
      _
    // Predicated region
    $region10: #{tpu_custom_call.1} parent=1 // pred_check
      _
    $region11: #{tpu_custom_call.1} parent=1 // pred_check_branch
      %14 = sbr.rel (0) target = $region13
    $region12: #{tpu_custom_call.1} parent=1 // pred_region
      _
    $region13: #{tpu_custom_call.1} parent=1 // pred_fallthru
      _
    %v15 = vld [vmem:[%s0] sm:$0xff]
    %v16 = vlaneseq
    %v17 = vand.u32 %v16, 127
    %18 = vset.pattern.permute.xlu0 0
    %19 = vperm.xlu0 %18, %v15
    %v20 = vpop.permute.xlu0 %19
    %vm21 = vcmp.eq.s32.totalorder %v17, %v20
    %v22 = vsel %vm21, 1, 0
    %v23 = vcvt.s32.f32 %v22
    %v24 = vld [vmem:[%s1] sm:$0xff]
    %v25 = vld [vmem:[%s1 + $0x8] sm:$0xff]
    %v26 = vld [vmem:[%s1 + $0x10] sm:$0xff]
    %v27 = vld [vmem:[%s1 + $0x18] sm:$0xff]
    %v28 = vld [vmem:[%s1 + $0x20] sm:$0xff]
    %v29 = vld [vmem:[%s1 + $0x28] sm:$0xff]
    %v30 = vld [vmem:[%s1 + $0x30] sm:$0x3]
    %vm31 = vcmask 408576
    %v33 = vsel %vm31, %v23, 0
    %vm35 = vcmask 1041408
    %v37 = vsel %vm35, %v30, 0
    %39 = vmatpush.msra.mxu0 0.0
    %40 = vmatpush.msra.mxu0 0.0
    %41 = vmatpush.msra.mxu0 0.0
    %42 = vmatpush.msra.mxu0 0.0
    %43 = vmatpush.msra.mxu0 0.0
    %44 = vmatpush.msra.mxu0 0.0
    %45 = vmatpush.msra.mxu0 0.0
    %46 = vmatpush.msra.mxu0 0.0
    %47 = vmatpush.msra.mxu0 0.0
    %48 = vmatpush.msra.mxu0 %v37
    %49 = vmatpush.msra.mxu0 %v29
    %50 = vmatpush.msra.mxu0 %v28
    %51 = vmatpush.msra.mxu0 %v27
    %52 = vmatpush.msra.mxu0 %v26
    %53 = vmatpush.msra.mxu0 %v25
    %54 = vmatpush.msra.mxu0 %v24
    %55 = vmatmul.f32.gmra.mxu0 %v33
    %v56 = vpop.f32.mrf.mxu0
    %v57 = vadd.f32 0.0, %v56
    %58 = vdwg.mxu0
    %v59 = vmul.f32 %v57, 5.656854
    %v60 = vld [vmem:[%s2] sm:$0xff]
    %v61 = vadd.f32 %v59, %v60
    %vm62 = vcmask 261120
    %63 = vst.msk [vmem:[#allocation2] sm:$0xff] %vm62, %v61
    // Predicated region
    $region14: #{tpu_custom_call.1} parent=1 // pred_check
      _
    $region15: #{tpu_custom_call.1} parent=1 // pred_check_branch
      %65 = sbr.rel (0) target = $region17
    $region16: #{tpu_custom_call.1} parent=1 // pred_region
      %67 = vsyncadd [#allocation3], 0
      %s69 = sshll.u32 [#allocation2], 4
      %s70 = int_to_ptr.vmem [resolvable:$true] %s69
      %s71 = sshll.u32 %s3, 4
      %s72 = int_to_ptr.hbm [resolvable:$true] %s71
      %74 = dma.vmem_to_hbm [thread:$0]  %s70, 128, %s72, [#allocation3]
    $region17: #{tpu_custom_call.1} parent=1 // pred_fallthru
      _
    // Predicated region
    $region18: #{tpu_custom_call.1} parent=1 // pred_check
      _
    $region19: #{tpu_custom_call.1} parent=1 // pred_check_branch
      %76 = sbr.rel (0) target = $region21
    $region20: #{tpu_custom_call.1} parent=1 // pred_region
      %78 = dma.done [#allocation3], 128
    $region21: #{tpu_custom_call.1} parent=1 // pred_fallthru
      _
    %79 = vsyncpa [#allocation3], 1

// kernel: tpu_custom_call.1
$region0: #{tpu_custom_call.1}
  #allocation0 [shape = 'u32[]', space=smem, size = 0x4, offset = 0x4, fixed_abs, tag = 'smem constant byte address 0x4 - core index']
  #allocation1 [shape = 'u32[72,128]{1,0:T(1,128)}', space=vmem, size = 0x9000, scoped, tag = 'internal scratch']
  %s0 = inlined_call_operand.vmem [shape: s32[8,1], index: 0, kind: input, shape index: {}]
  %s1 = inlined_call_operand.vmem [shape: f32[50,32], index: 1, kind: input, shape index: {}]
  %s2 = inlined_call_operand.vmem [shape: f32[8,32], index: 2, kind: input, shape index: {}]
  %s3 = inlined_call_operand.hbm [shape: f32[8,32], index: 3, kind: output, shape index: {}]
  %s4 = sld [smem:[#allocation0]]
  $region22: #{tpu_custom_call.1} parent=0
    _
  %s6 = ssub.s32 1, %s4
  %s7 = scalar_select 0, %s6, %s4
  $region1: #{tpu_custom_call.1} parent=0
    #allocation2 [shape = 'u8[4096]{0}', space=vmem, size = 0x1000, scoped, tag = 'output window, operand 0, single buffered']
    #allocation3 [shape = 's32[1]{0}', space=sflag, size = 0x4, scoped, tag = 'scoped memory for tpu_custom_call.1']
    %8 = vsyncpa [#allocation3], 0
    // Predicated region
    $region2: #{tpu_custom_call.1} parent=1 // pred_check
      _
    $region3: #{tpu_custom_call.1} parent=1 // pred_check_branch
      %10 = sbr.rel (0) target = $region5
    $region4: #{tpu_custom_call.1} parent=1 // pred_region
      _
    $region5: #{tpu_custom_call.1} parent=1 // pred_fallthru
      _
    // Predicated region
    $region6: #{tpu_custom_call.1} parent=1 // pred_check
      _
    $region7: #{tpu_custom_call.1} parent=1 // pred_check_branch
      %12 = sbr.rel (0) target = $region9
    $region8: #{tpu_custom_call.1} parent=1 // pred_region
      _
    $region9: #{tpu_custom_call.1} parent=1 // pred_fallthru
      _
    // Predicated region
    $region10: #{tpu_custom_call.1} parent=1 // pred_check
      _
    $region11: #{tpu_custom_call.1} parent=1 // pred_check_branch
      %14 = sbr.rel (0) target = $region13
    $region12: #{tpu_custom_call.1} parent=1 // pred_region
      _
    $region13: #{tpu_custom_call.1} parent=1 // pred_fallthru
      _
    %v15 = vld [vmem:[%s0] sm:$0xff]
    %v16 = vlaneseq
    %v17 = vand.u32 %v16, 127
    %18 = vset.pattern.permute.xlu0 0
    %19 = vperm.xlu0 %18, %v15
    %v20 = vpop.permute.xlu0 %19
    %vm21 = vcmp.eq.s32.totalorder %v17, %v20
    %v22 = vsel %vm21, 1, 0
    %v23 = vcvt.s32.f32 %v22
    %v24 = vld [vmem:[%s1] sm:$0xff]
    %v25 = vld [vmem:[%s1 + $0x8] sm:$0xff]
    %v26 = vld [vmem:[%s1 + $0x10] sm:$0xff]
    %v27 = vld [vmem:[%s1 + $0x18] sm:$0xff]
    %v28 = vld [vmem:[%s1 + $0x20] sm:$0xff]
    %v29 = vld [vmem:[%s1 + $0x28] sm:$0xff]
    %v30 = vld [vmem:[%s1 + $0x30] sm:$0x3]
    %vm31 = vcmask 408576
    %v33 = vsel %vm31, %v23, 0
    %vm35 = vcmask 1041408
    %v37 = vsel %vm35, %v30, 0
    %39 = vmatpush.msra.mxu0 0.0
    %40 = vmatpush.msra.mxu0 0.0
    %41 = vmatpush.msra.mxu0 0.0
    %42 = vmatpush.msra.mxu0 0.0
    %43 = vmatpush.msra.mxu0 0.0
    %44 = vmatpush.msra.mxu0 0.0
    %45 = vmatpush.msra.mxu0 0.0
    %46 = vmatpush.msra.mxu0 0.0
    %47 = vmatpush.msra.mxu0 0.0
    %48 = vmatpush.msra.mxu0 %v37
    %49 = vmatpush.msra.mxu0 %v29
    %50 = vmatpush.msra.mxu0 %v28
    %51 = vmatpush.msra.mxu0 %v27
    %52 = vmatpush.msra.mxu0 %v26
    %53 = vmatpush.msra.mxu0 %v25
    %54 = vmatpush.msra.mxu0 %v24
    %55 = vmatmul.f32.gmra.mxu0 %v33
    %v56 = vpop.f32.mrf.mxu0
    %v57 = vadd.f32 0.0, %v56
    %58 = vdwg.mxu0
    %v59 = vmul.f32 %v57, 5.656854
    %v60 = vld [vmem:[%s2] sm:$0xff]
    %v61 = vadd.f32 %v59, %v60
    %vm62 = vcmask 261120
    %63 = vst.msk [vmem:[#allocation2] sm:$0xff] %vm62, %v61
    // Predicated region
    $region14: #{tpu_custom_call.1} parent=1 // pred_check
      _
    $region15: #{tpu_custom_call.1} parent=1 // pred_check_branch
      %65 = sbr.rel (0) target = $region17
    $region16: #{tpu_custom_call.1} parent=1 // pred_region
      %67 = vsyncadd [#allocation3], 0
      %s69 = sshll.u32 [#allocation2], 4
      %s70 = int_to_ptr.vmem [resolvable:$true] %s69
      %s71 = sshll.u32 %s3, 4
      %s72 = int_to_ptr.hbm [resolvable:$true] %s71
      %74 = dma.vmem_to_hbm [thread:$0]  %s70, 128, %s72, [#allocation3]
    $region17: #{tpu_custom_call.1} parent=1 // pred_fallthru
      _
    // Predicated region
    $region18: #{tpu_custom_call.1} parent=1 // pred_check
      _
    $region19: #{tpu_custom_call.1} parent=1 // pred_check_branch
      %76 = sbr.rel (0) target = $region21
    $region20: #{tpu_custom_call.1} parent=1 // pred_region
      %78 = dma.done [#allocation3], 128
    $region21: #{tpu_custom_call.1} parent=1 // pred_fallthru
      _
    %79 = vsyncpa [#allocation3], 1

</llo_original>
